<compile_context>
chip_gen: v7x
topology: tpu7x:2x2x1
jax: 0.10.0
libtpu: 0.0.40
codegen_flags: <defaults>
</compile_context>

<pallas_src>
import numpy as np
import jax
import jax.numpy as jnp
from jax.experimental import pallas as pl
from jax.experimental.pallas import tpu as pltpu


# ---------------------------------------------------------------------------
# PE table construction (matches the PyTorch __init__ exactly, incl. odd d_model)
# ---------------------------------------------------------------------------
def _build_pe(d_model: int, max_len: int = 500) -> jnp.ndarray:
    position = np.arange(0, max_len, dtype=np.float32)[:, None]              # (max_len, 1)
    div_term = np.exp(
        np.arange(0, d_model, 2, dtype=np.float32) * (-np.log(10000.0) / d_model)
    )                                                                        # (ceil(d/2),)
    pe = np.zeros((max_len, d_model), dtype=np.float32)
    sin_part = np.sin(position * div_term)
    cos_part = np.cos(position * div_term)
    pe[:, 0::2] = sin_part
    n_odd = pe[:, 1::2].shape[1]
    pe[:, 1::2] = cos_part[:, :n_odd]
    return jnp.asarray(pe)                                                   # (max_len, d_model)


def precompute_pe_rows(pe: jnp.ndarray, seq_len: int, dtype) -> jnp.ndarray:
    """Hoisted init-time work: slice to seq_len, cast to the model dtype and
    flatten to the (1, seq_len * d_model) lane-dense row the kernel consumes."""
    max_len, d_model = pe.shape
    if seq_len > max_len:
        raise ValueError(f"seq_len={seq_len} exceeds max_len={max_len} of the PE table")
    return pe[:seq_len, :].astype(dtype).reshape(1, seq_len * d_model)


# ---------------------------------------------------------------------------
# Kernel body: single broadcast add (PE row sublane-broadcasts over TB rows)
# ---------------------------------------------------------------------------
def _pe_add_kernel(x_ref, pe_ref, o_ref):
    o_ref[...] = x_ref[...] + pe_ref[...]


# ---------------------------------------------------------------------------
# Tiling policy
# ---------------------------------------------------------------------------
_BUDGET_BYTES = 16 * 1024 * 1024          # double-buffered working-set budget
_TARGET_TILE_BYTES = 2 * 1024 * 1024      # aim for >= ~2 MiB per buffer
_MIN_SPLIT_BYTES = 2 * 1024 * 1024        # only force multi-step grids above this
_BIG_SPLIT_BYTES = 32 * 1024 * 1024       # ... and aim for >= 4 steps above this


def _sublane(itemsize: int) -> int:
    # native packed sublane tile: 8 for 4-byte, 16 for 2-byte, 32 for 1-byte
    return {4: 8, 2: 16, 1: 32}.get(itemsize, 8)


def _round_up(x: int, m: int) -> int:
    return ((x + m - 1) // m) * m


def _choose_tiles(B: int, N: int, itemsize: int):
    """Pick (row_tile TB, col_tile TC) for the flattened (B, N) view."""
    sub = _sublane(itemsize)

    # Initial row tile.
    TB = B if B <= 256 else 256
    padded_tb = _round_up(max(TB, 1), sub)

    # Column budget: 2x buffers * (x tile + out tile + padded pe row) per column.
    denom = 2 * (2 * padded_tb + sub) * itemsize
    tc_max = max(128, (_BUDGET_BYTES // denom) // 128 * 128)

    if N <= tc_max:
        TC = N                                   # full extent -> lane-dense, no tail
        # Budget-driven row tile: grow TB so each buffer is >= ~2 MiB.
        rows_target = -(-_TARGET_TILE_BYTES // max(TC * itemsize, 1))
        rows_budget = max(sub, (_BUDGET_BYTES // (2 * TC * itemsize) - sub) // 2)
        rows = min(max(TB, rows_target), max(rows_budget, TB))
        if rows >= B:
            TB = B
        else:
            TB = max(sub, (rows // sub) * sub)
    else:
        # Split columns near-evenly in 128-lane units (no tiny ragged tail tile).
        lanes = -(-N // 128)
        n_tiles = -(-lanes // (tc_max // 128))
        TC = 128 * (-(-lanes // n_tiles))
        TC = min(TC, tc_max)

    return int(TB), int(TC)


def _ensure_min_steps(B: int, N: int, TB: int, TC: int, itemsize: int):
    """Guarantee enough grid steps for v7x's 2 TensorCores on non-tiny inputs."""
    total_bytes = B * N * itemsize
    if total_bytes < _MIN_SPLIT_BYTES:
        return TB, TC
    min_steps = 4 if total_bytes >= _BIG_SPLIT_BYTES else 2
    sub = _sublane(itemsize)

    def steps(tb, tc):
        return (-(-B // tb)) * (-(-N // tc))

    while steps(TB, TC) < min_steps:
        if (TB // 2) >= sub:
            TB = max(sub, ((TB // 2) // sub) * sub)       # prefer splitting rows
        elif (TC // 2) >= 128:
            TC = max(128, ((TC // 2) // 128) * 128)       # else split columns
        else:
            break
    return TB, TC


# ---------------------------------------------------------------------------
# Forward
# ---------------------------------------------------------------------------
def positional_encoding_forward(x: jnp.ndarray, pe2: jnp.ndarray, *,
                                donate_x: bool = False) -> jnp.ndarray:
    """x: (B, S, D); pe2: (1, S*D) precomputed by precompute_pe_rows."""
    B, S, D = x.shape
    N = S * D
    if pe2.shape != (1, N):
        raise ValueError(f"pe2 shape {pe2.shape} does not match (1, {N})")

    x2 = x.reshape(B, N)                                  # free row-major view
    itemsize = np.dtype(x.dtype).itemsize
    TB, TC = _choose_tiles(B, N, itemsize)
    TB, TC = _ensure_min_steps(B, N, TB, TC, itemsize)

    grid = (pl.cdiv(N, TC), pl.cdiv(B, TB))               # cols outer -> PE reuse over rows

    out2 = pl.pallas_call(
        _pe_add_kernel,
        out_shape=jax.ShapeDtypeStruct((B, N), x.dtype),
        grid=grid,
        in_specs=[
            pl.BlockSpec((TB, TC), lambda c, r: (r, c)),      # x tile
            pl.BlockSpec((1, TC), lambda c, r: (0, c)),       # pe tile (batch-invariant)
        ],
        out_specs=pl.BlockSpec((TB, TC), lambda c, r: (r, c)),
        input_output_aliases=({0: 0} if donate_x else {}),
        compiler_params=pltpu.CompilerParams(
            dimension_semantics=("parallel", "parallel"),
            vmem_limit_bytes=48 * 1024 * 1024,            # safe on v7x's 64 MiB VMEM
        ),
    )(x2, pe2)

    return out2.reshape(B, S, D)


def positional_encoding_forward_from_table(x: jnp.ndarray, pe: jnp.ndarray) -> jnp.ndarray:
    """Convenience wrapper taking the full (max_len, D) table (slices per call)."""
    B, S, D = x.shape
    pe2 = precompute_pe_rows(pe, S, x.dtype)
    return positional_encoding_forward(x, pe2)


if __name__ == "__main__":
    B, S, D = 2, 8, 32
    MAX_LEN = 500

    key = jax.random.PRNGKey(0)
    x = jax.random.normal(key, (B, S, D), dtype=jnp.float32)

    pe = _build_pe(D, MAX_LEN)
    pe2 = precompute_pe_rows(pe, S, x.dtype)              # hoisted out of the hot path

    out = jax.block_until_ready(positional_encoding_forward(x, pe2))

    # reference check (plain JAX)
    ref = x + pe[:S, :][None, :, :]
    assert out.shape == (B, S, D)
    np.testing.assert_allclose(np.asarray(out), np.asarray(ref), rtol=1e-6, atol=1e-6)

    print("KERNEL_OK")
</pallas_src>

<mosaic_0001>
module attributes {stable_mosaic.version = 11 : i64} {
  func.func @_pe_add_kernel(%arg0: i32, %arg1: i32, %arg2: memref<2x256xf32, #tpu.memory_space<vmem>>, %arg3: memref<1x256xf32, #tpu.memory_space<vmem>>, %arg4: memref<2x256xf32, #tpu.memory_space<vmem>>) attributes {dimension_semantics = [#tpu.dimension_semantics<parallel>, #tpu.dimension_semantics<parallel>], iteration_bounds = array<i64: 1, 1>, scalar_prefetch = 0 : i64, scratch_operands = 0 : i64, tpu.core_type = #tpu.core_type<tc>, window_params = [{transform_indices = @transform_0, window_bounds = array<i64: 2, 256>}, {transform_indices = @transform_1, window_bounds = array<i64: 1, 256>}, {transform_indices = @transform_2, window_bounds = array<i64: 2, 256>}]} {
    %c0 = arith.constant 0 : index
    %c0_0 = arith.constant 0 : index
    %0 = vector.load %arg2[%c0, %c0_0] : memref<2x256xf32, #tpu.memory_space<vmem>>, vector<2x256xf32>
    %c0_1 = arith.constant 0 : index
    %c0_2 = arith.constant 0 : index
    %1 = vector.load %arg3[%c0_1, %c0_2] : memref<1x256xf32, #tpu.memory_space<vmem>>, vector<1x256xf32>
    %2 = vector.broadcast %1 : vector<1x256xf32> to vector<2x256xf32>
    %3 = arith.addf %0, %2 : vector<2x256xf32>
    %c0_3 = arith.constant 0 : index
    %c0_4 = arith.constant 0 : index
    %4 = vector.load %arg4[%c0_3, %c0_4] : memref<2x256xf32, #tpu.memory_space<vmem>>, vector<2x256xf32>
    tpu.vector_store %arg4[%c0_3, %c0_4], %3 {strides = array<i32>} : memref<2x256xf32, #tpu.memory_space<vmem>>, vector<2x256xf32>,
    return
  }
  func.func @transform_0(%arg0: i32, %arg1: i32) -> (i32, i32) {
    %c0_i32 = arith.constant 0 : i32
    return %arg1, %arg0 : i32, i32
  }
  func.func @transform_1(%arg0: i32, %arg1: i32) -> (i32, i32) {
    %c0_i32 = arith.constant 0 : i32
    %c0_i32_0 = arith.constant 0 : i32
    return %c0_i32, %arg0 : i32, i32
  }
  func.func @transform_2(%arg0: i32, %arg1: i32) -> (i32, i32) {
    %c0_i32 = arith.constant 0 : i32
    return %arg1, %arg0 : i32, i32
  }
}

</mosaic_0001>

<llo_original>
// kernel: tpu_custom_call.1
$region0: #{tpu_custom_call.1}
  #allocation0 [shape = 'u32[]', space=smem, size = 0x4, offset = 0x4, fixed_abs, tag = 'smem constant byte address 0x4 - core index']
  #allocation1 [shape = 'u32[144,128]{1,0:T(1,128)}', space=vmem, size = 0x12000, scoped, tag = 'internal scratch']
  %s0 = inlined_call_operand.hbm [shape: f32[2,256], index: 0, kind: input, shape index: {}]
  %s1 = inlined_call_operand.vmem [shape: f32[1,256], index: 1, kind: input, shape index: {}]
  %s2 = inlined_call_operand.hbm [shape: f32[2,256], index: 2, kind: output, shape index: {}]
  %s3 = sld [smem:[#allocation0]]
  $region22: #{tpu_custom_call.1} parent=0
    _
  %s5 = ssub.s32 1, %s3
  %s6 = scalar_select 0, %s5, %s3
  $region1: #{tpu_custom_call.1} parent=0
    #allocation2 [shape = 'u8[2048]{0}', space=vmem, size = 0x800, scoped, tag = 'input window, operand 0, single buffered']
    #allocation3 [shape = 's32[1]{0}', space=sflag, size = 0x4, scoped, tag = 'scoped memory for tpu_custom_call.1']
    #allocation4 [shape = 's32[1]{0}', space=sflag, size = 0x4, scoped, tag = 'scoped memory for tpu_custom_call.1']
    #allocation5 [shape = 'u8[2048]{0}', space=vmem, size = 0x800, scoped, tag = 'output window, operand 0, single buffered']
    %7 = vsyncpa [#allocation3], 0
    %8 = vsyncpa [#allocation4], 0
    // Predicated region
    $region2: #{tpu_custom_call.1} parent=1 // pred_check
      _
    $region3: #{tpu_custom_call.1} parent=1 // pred_check_branch
      %10 = sbr.rel (0) target = $region5
    $region4: #{tpu_custom_call.1} parent=1 // pred_region
      %s12 = ssub.s32 64, 64
      %13 = vsyncadd [#allocation3], %s12
      %s15 = sshll.u32 [#allocation2], 4
      %s16 = int_to_ptr.vmem [resolvable:$true] %s15
      %18 = dma.hbm_to_vmem [thread:$0]  %s0, 64, %s16, [#allocation3]
    $region5: #{tpu_custom_call.1} parent=1 // pred_fallthru
      _
    // Predicated region
    $region6: #{tpu_custom_call.1} parent=1 // pred_check
      _
    $region7: #{tpu_custom_call.1} parent=1 // pred_check_branch
      %20 = sbr.rel (0) target = $region9
    $region8: #{tpu_custom_call.1} parent=1 // pred_region
      _
    $region9: #{tpu_custom_call.1} parent=1 // pred_fallthru
      _
    // Predicated region
    $region10: #{tpu_custom_call.1} parent=1 // pred_check
      _
    $region11: #{tpu_custom_call.1} parent=1 // pred_check_branch
      %22 = sbr.rel (0) target = $region13
    $region12: #{tpu_custom_call.1} parent=1 // pred_region
      %23 = dma.done [#allocation3], 64
    $region13: #{tpu_custom_call.1} parent=1 // pred_fallthru
      _
    %v24 = vld [vmem:[#allocation2] sm:$0xf]
    %v25 = vld [vmem:[%s1] sm:$0x3]
    %v27 = vlaneseq
    %v28 = vshrl.u32 %v27, 7
    %v29 = vsub.s32 0, %v28
    %v30 = vrot.slane %v25, %v29
    %v31 = vlaneseq
    %v32 = vshrl.u32 %v31, 7
    %v33 = vsub.s32 1, %v32
    %v34 = vrot.slane %v25, %v33
    %v35 = vcombine.low %v30, %v34
    %v37 = vunpack.c.l.s4 1983009808
    %v38 = vunpack.c.0.s8 %v37
    %v39 = vlaneseq
    %v40 = vshrl.u32 %v39, 7
    %v41 = vsub.s32 %v38, %v40
    %v42 = vrot.slane %v35, %v41
    %v44 = vadd.f32 %v24, %v42
    %45 = vst [vmem:[#allocation5] sm:$0xf] %v44
    // Predicated region
    $region14: #{tpu_custom_call.1} parent=1 // pred_check
      _
    $region15: #{tpu_custom_call.1} parent=1 // pred_check_branch
      %47 = sbr.rel (0) target = $region17
    $region16: #{tpu_custom_call.1} parent=1 // pred_region
      %s49 = ssub.s32 64, 64
      %50 = vsyncadd [#allocation4], %s49
      %s52 = sshll.u32 [#allocation5], 4
      %s53 = int_to_ptr.vmem [resolvable:$true] %s52
      %55 = dma.vmem_to_hbm [thread:$0]  %s53, 64, %s2, [#allocation4]
    $region17: #{tpu_custom_call.1} parent=1 // pred_fallthru
      _
    // Predicated region
    $region18: #{tpu_custom_call.1} parent=1 // pred_check
      _
    $region19: #{tpu_custom_call.1} parent=1 // pred_check_branch
      %57 = sbr.rel (0) target = $region21
    $region20: #{tpu_custom_call.1} parent=1 // pred_region
      %58 = dma.done [#allocation4], 64
    $region21: #{tpu_custom_call.1} parent=1 // pred_fallthru
      _
    %59 = vsyncpa [#allocation3], 1
    %60 = vsyncpa [#allocation4], 1

</llo_original>
